<compile_context>
chip_gen: v6e
topology: v6e:2x2x1
jax: 0.10.0
libtpu: 0.0.40
codegen_flags: <defaults>
</compile_context>

<pallas_src>
import jax
import jax.numpy as jnp
from jax.experimental import pallas as pl
from jax.experimental.pallas import tpu as pltpu


def mlpnorm_kernel(x_ref, w1_ref, b1_ref, w2_ref, b2_ref, o_ref):
    # Cast the streamed x tile to the matmul dtype in-register (no wrapper-side
    # HBM round-trip); MXU accumulates in f32.
    x = x_ref[...].astype(w1_ref.dtype)

    # Hidden linear (BN already folded into w1/b1): (TM, Din) @ (Din, Dmid) + (1, Dmid)
    h = jnp.dot(x, w1_ref[...], preferred_element_type=jnp.float32)
    h = h + b1_ref[...]

    # Dropout(p=0.2): identity in eval mode.
    # TODO(synk): training-mode dropout RNG masking not implemented.

    # LeakyReLU, default negative_slope = 0.01
    h = jnp.where(h >= 0, h, 0.01 * h)

    # Output linear: (TM, Dmid) @ (Dmid, Dout) + (1, Dout)
    y = jnp.dot(h.astype(w2_ref.dtype), w2_ref[...],
                preferred_element_type=jnp.float32)
    y = y + b2_ref[...]

    # F.normalize(p=2, dim=-1): y / max(||y||, 1e-12) == y * rsqrt(max(sumsq, 1e-24))
    sumsq = jnp.sum(y * y, axis=-1, keepdims=True)
    inv_norm = jax.lax.rsqrt(jnp.maximum(sumsq, 1e-24))
    o_ref[...] = (y * inv_norm).astype(o_ref.dtype)


def fold_bn_params(params, *, eps=1e-5, matmul_dtype=jnp.float32, pad_hidden_to=128):
    """One-time parameter transform: fold BatchNorm1d (eval) into the first Linear,
    and zero-pad the hidden dim to a lane-dense multiple (free: weights are tiny)."""
    w1, b1, gamma, beta, rmean, rvar, w2, b2 = params
    scale = gamma * jax.lax.rsqrt(rvar + eps)             # (1, dim_mid)
    w1f = w1 * scale                                       # column-wise scale (f32)
    b1f = (b1 - rmean) * scale + beta
    w2f = w2

    if pad_hidden_to:
        dim_mid = w1f.shape[1]
        pad = (-dim_mid) % pad_hidden_to
        if pad:
            # Zero columns of W1/b1 and zero rows of W2: padded hidden channels stay
            # exactly 0 through bias/LeakyReLU and contribute nothing to the output.
            w1f = jnp.pad(w1f, ((0, 0), (0, pad)))
            b1f = jnp.pad(b1f, ((0, 0), (0, pad)))
            w2f = jnp.pad(w2f, ((0, pad), (0, 0)))

    return (w1f.astype(matmul_dtype), b1f.astype(jnp.float32),
            w2f.astype(matmul_dtype), b2.astype(jnp.float32))


def _round_up(v, m):
    return ((v + m - 1) // m) * m


def mlp_norm(x, folded_params, *, tile_m=2048, out_dtype=jnp.float32):
    w1, b1, w2, b2 = folded_params
    N, dim_inp = x.shape
    assert dim_inp == w1.shape[0]
    dim_mid = w1.shape[1]
    dim_out = w2.shape[1]

    # Row-tile multiple: 16 when the matmul dtype is bf16 (bf16 (16,128) packing),
    # else 8 ((8,128) f32 tiling).
    mult = 16 if jnp.dtype(w1.dtype) == jnp.dtype(jnp.bfloat16) else 8

    tile_m = int(tile_m)
    if N >= 2 * mult:
        # Ensure at least 2 row tiles so the "parallel" grid axis can shard across
        # megacore / both v7x TensorCores for modest batches.
        tile_m = min(tile_m, _round_up(pl.cdiv(N, 2), mult))
    else:
        tile_m = min(tile_m, _round_up(max(N, 1), mult))
    tile_m = max(mult, _round_up(tile_m, mult))

    n_tiles = pl.cdiv(N, tile_m)

    x_item = jnp.dtype(x.dtype).itemsize
    w_item = jnp.dtype(w1.dtype).itemsize
    o_item = jnp.dtype(out_dtype).itemsize

    # Double-buffered VMEM footprint; only raise the scoped limit when we would
    # brush the v5e default (16 MiB). Cap well below v7x's 64 MiB physical VMEM.
    vmem_needed = (2 * tile_m * dim_inp * x_item           # x double buffer
                   + 2 * tile_m * dim_out * o_item          # out double buffer
                   + 2 * (dim_inp * dim_mid + dim_mid * dim_out) * w_item
                   + 2 * (dim_mid + dim_out) * 4)
    vmem_limit = None
    if vmem_needed > 12 * 1024 * 1024:
        vmem_limit = min(vmem_needed + (8 << 20), 56 << 20)

    cost = pl.CostEstimate(
        flops=2 * N * dim_mid * (dim_inp + dim_out),
        transcendentals=N,  # one rsqrt per row
        bytes_accessed=(N * dim_inp * x_item                         # x
                        + N * dim_out * o_item                       # out
                        + (dim_inp * dim_mid + dim_mid * dim_out) * w_item
                        + (dim_mid + dim_out) * 4),                  # biases
    )

    out = pl.pallas_call(
        mlpnorm_kernel,
        out_shape=jax.ShapeDtypeStruct((N, dim_out), out_dtype),
        grid_spec=pltpu.PrefetchScalarGridSpec(
            num_scalar_prefetch=0,
            grid=(n_tiles,),
            in_specs=[
                pl.BlockSpec((tile_m, dim_inp), lambda i: (i, 0)),   # x tile (streamed)
                pl.BlockSpec((dim_inp, dim_mid), lambda i: (0, 0)),  # W1 (BN folded, resident)
                pl.BlockSpec((1, dim_mid), lambda i: (0, 0)),        # b1 (BN folded, resident)
                pl.BlockSpec((dim_mid, dim_out), lambda i: (0, 0)),  # W2 (resident)
                pl.BlockSpec((1, dim_out), lambda i: (0, 0)),        # b2 (resident)
            ],
            out_specs=pl.BlockSpec((tile_m, dim_out), lambda i: (i, 0)),
        ),
        compiler_params=pltpu.CompilerParams(
            dimension_semantics=("parallel",),
            vmem_limit_bytes=vmem_limit),
        cost_estimate=cost,
    )(x, w1, b1, w2, b2)

    return out


def init_params(key, dim_inp=256, dim_out=64):
    dim_mid = min(dim_inp, dim_out)
    k1, k2, k3, k4 = jax.random.split(key, 4)

    # PyTorch Linear default init: U(-1/sqrt(fan_in), 1/sqrt(fan_in))
    bound1 = 1.0 / (dim_inp ** 0.5)
    w1 = jax.random.uniform(k1, (dim_inp, dim_mid), jnp.float32, -bound1, bound1)
    b1 = jax.random.uniform(k2, (1, dim_mid), jnp.float32, -bound1, bound1)

    # BatchNorm1d default parameters / running stats
    gamma = jnp.ones((1, dim_mid), jnp.float32)
    beta = jnp.zeros((1, dim_mid), jnp.float32)
    rmean = jnp.zeros((1, dim_mid), jnp.float32)
    rvar = jnp.ones((1, dim_mid), jnp.float32)

    bound2 = 1.0 / (dim_mid ** 0.5)
    w2 = jax.random.uniform(k3, (dim_mid, dim_out), jnp.float32, -bound2, bound2)
    b2 = jax.random.uniform(k4, (1, dim_out), jnp.float32, -bound2, bound2)

    return (w1, b1, gamma, beta, rmean, rvar, w2, b2)


def reference(x, params):
    w1, b1, gamma, beta, rmean, rvar, w2, b2 = params
    h = x @ w1 + b1
    h = (h - rmean) * gamma / jnp.sqrt(rvar + 1e-5) + beta
    h = jnp.where(h >= 0, h, 0.01 * h)
    y = h @ w2 + b2
    n = jnp.sqrt(jnp.sum(y * y, axis=-1, keepdims=True))
    return y / jnp.maximum(n, 1e-12)


if __name__ == "__main__":
    dim_inp, dim_out = 256, 64
    N = 16  # small deterministic test batch

    key = jax.random.PRNGKey(0)
    kx, kp = jax.random.split(key)
    x = jax.random.normal(kx, (N, dim_inp), jnp.float32)
    params = init_params(kp, dim_inp, dim_out)
    ref = reference(x, params)

    # f32 matmul path: tight tolerance (BN folding + hidden-dim padding + rsqrt norm).
    folded_f32 = fold_bn_params(params, matmul_dtype=jnp.float32)
    out_f32 = jax.block_until_ready(mlp_norm(x, folded_f32))
    assert out_f32.shape == (N, dim_out)
    assert jnp.allclose(out_f32, ref, atol=1e-5, rtol=1e-5)

    # bf16 matmul path (f32 x streamed from HBM, cast in-register): looser tolerance.
    folded_bf16 = fold_bn_params(params, matmul_dtype=jnp.bfloat16)
    out_bf16 = jax.block_until_ready(mlp_norm(x, folded_bf16))
    assert out_bf16.shape == (N, dim_out)
    assert jnp.allclose(out_bf16, ref, atol=5e-2, rtol=5e-2)

    # bf16 output path (halves writeback for a bandwidth-bound kernel).
    out_bf16_o = jax.block_until_ready(
        mlp_norm(x, folded_bf16, out_dtype=jnp.bfloat16))
    assert out_bf16_o.shape == (N, dim_out)
    assert out_bf16_o.dtype == jnp.bfloat16
    assert jnp.allclose(out_bf16_o.astype(jnp.float32), ref, atol=5e-2, rtol=5e-2)

    print("KERNEL_OK")
</pallas_src>

<mosaic_0001>
module attributes {stable_mosaic.version = 11 : i64} {
  func.func @mlpnorm_kernel(%arg0: i32, %arg1: memref<8x256xf32, #tpu.memory_space<vmem>>, %arg2: memref<256x128xf32, #tpu.memory_space<vmem>>, %arg3: memref<1x128xf32, #tpu.memory_space<vmem>>, %arg4: memref<128x64xf32, #tpu.memory_space<vmem>>, %arg5: memref<1x64xf32, #tpu.memory_space<vmem>>, %arg6: memref<8x64xf32, #tpu.memory_space<vmem>>) attributes {dimension_semantics = [#tpu.dimension_semantics<parallel>], iteration_bounds = array<i64: 2>, scalar_prefetch = 0 : i64, scratch_operands = 0 : i64, tpu.core_type = #tpu.core_type<tc>, window_params = [{transform_indices = @transform_0, window_bounds = array<i64: 8, 256>}, {pipeline_mode = #tpu.pipeline_mode<synchronous>, transform_indices = @transform_1, window_bounds = array<i64: 256, 128>}, {pipeline_mode = #tpu.pipeline_mode<synchronous>, transform_indices = @transform_2, window_bounds = array<i64: 1, 128>}, {pipeline_mode = #tpu.pipeline_mode<synchronous>, transform_indices = @transform_3, window_bounds = array<i64: 128, 64>}, {pipeline_mode = #tpu.pipeline_mode<synchronous>, transform_indices = @transform_4, window_bounds = array<i64: 1, 64>}, {transform_indices = @transform_5, window_bounds = array<i64: 8, 64>}]} {
    %c0 = arith.constant 0 : index
    %c0_0 = arith.constant 0 : index
    %0 = vector.load %arg1[%c0, %c0_0] : memref<8x256xf32, #tpu.memory_space<vmem>>, vector<8x256xf32>
    %c0_1 = arith.constant 0 : index
    %c0_2 = arith.constant 0 : index
    %1 = vector.load %arg2[%c0_1, %c0_2] : memref<256x128xf32, #tpu.memory_space<vmem>>, vector<256x128xf32>
    %cst = arith.constant dense<0.000000e+00> : vector<8x128xf32>
    %2 = tpu.matmul %0, %1, %cst {dimension_numbers = #tpu.dot_dimension_numbers<[1], [0], [0], [1], [0, 0, 1, 1], [], []>} : vector<8x256xf32>, vector<256x128xf32>, vector<8x128xf32> -> vector<8x128xf32>
    %c0_3 = arith.constant 0 : index
    %c0_4 = arith.constant 0 : index
    %3 = vector.load %arg3[%c0_3, %c0_4] : memref<1x128xf32, #tpu.memory_space<vmem>>, vector<1x128xf32>
    %4 = vector.broadcast %3 : vector<1x128xf32> to vector<8x128xf32>
    %5 = arith.addf %2, %4 : vector<8x128xf32>
    %cst_5 = arith.constant 0.000000e+00 : f32
    %6 = vector.broadcast %cst_5 : f32 to vector<8x128xf32>
    %7 = arith.cmpf oge, %5, %6 : vector<8x128xf32>
    %cst_6 = arith.constant 0.00999999977 : f32
    %8 = vector.broadcast %cst_6 : f32 to vector<8x128xf32>
    %9 = arith.mulf %8, %5 : vector<8x128xf32>
    %10 = arith.select %7, %5, %9 : vector<8x128xi1>, vector<8x128xf32>
    %c0_7 = arith.constant 0 : index
    %c0_8 = arith.constant 0 : index
    %11 = vector.load %arg4[%c0_7, %c0_8] : memref<128x64xf32, #tpu.memory_space<vmem>>, vector<128x64xf32>
    %cst_9 = arith.constant dense<0.000000e+00> : vector<8x64xf32>
    %12 = tpu.matmul %10, %11, %cst_9 {dimension_numbers = #tpu.dot_dimension_numbers<[1], [0], [0], [1], [0, 0, 1, 1], [], []>} : vector<8x128xf32>, vector<128x64xf32>, vector<8x64xf32> -> vector<8x64xf32>
    %c0_10 = arith.constant 0 : index
    %c0_11 = arith.constant 0 : index
    %13 = vector.load %arg5[%c0_10, %c0_11] : memref<1x64xf32, #tpu.memory_space<vmem>>, vector<1x64xf32>
    %14 = vector.broadcast %13 : vector<1x64xf32> to vector<8x64xf32>
    %15 = arith.addf %12, %14 : vector<8x64xf32>
    %16 = arith.mulf %15, %15 : vector<8x64xf32>
    %cst_12 = arith.constant dense<0.000000e+00> : vector<8xf32>
    %17 = vector.multi_reduction <add>, %16, %cst_12 [1] : vector<8x64xf32> to vector<8xf32>
    %18 = vector.shape_cast %17 : vector<8xf32> to vector<8x1xf32>
    %cst_13 = arith.constant 1.000000e-24 : f32
    %19 = vector.broadcast %cst_13 : f32 to vector<8x1xf32>
    %20 = arith.maximumf %18, %19 : vector<8x1xf32>
    %21 = math.rsqrt %20 : vector<8x1xf32>
    %22 = vector.broadcast %21 : vector<8x1xf32> to vector<8x64xf32>
    %23 = arith.mulf %15, %22 : vector<8x64xf32>
    %c0_14 = arith.constant 0 : index
    %c0_15 = arith.constant 0 : index
    %24 = vector.load %arg6[%c0_14, %c0_15] : memref<8x64xf32, #tpu.memory_space<vmem>>, vector<8x64xf32>
    tpu.vector_store %arg6[%c0_14, %c0_15], %23 {strides = array<i32>} : memref<8x64xf32, #tpu.memory_space<vmem>>, vector<8x64xf32>,
    return
  }
  func.func @transform_0(%arg0: i32) -> (i32, i32) {
    %c0_i32 = arith.constant 0 : i32
    %c0_i32_0 = arith.constant 0 : i32
    return %arg0, %c0_i32 : i32, i32
  }
  func.func @transform_1(%arg0: i32) -> (i32, i32) {
    %c0_i32 = arith.constant 0 : i32
    %c0_i32_0 = arith.constant 0 : i32
    %c0_i32_1 = arith.constant 0 : i32
    return %c0_i32, %c0_i32_0 : i32, i32
  }
  func.func @transform_2(%arg0: i32) -> (i32, i32) {
    %c0_i32 = arith.constant 0 : i32
    %c0_i32_0 = arith.constant 0 : i32
    %c0_i32_1 = arith.constant 0 : i32
    return %c0_i32, %c0_i32_0 : i32, i32
  }
  func.func @transform_3(%arg0: i32) -> (i32, i32) {
    %c0_i32 = arith.constant 0 : i32
    %c0_i32_0 = arith.constant 0 : i32
    %c0_i32_1 = arith.constant 0 : i32
    return %c0_i32, %c0_i32_0 : i32, i32
  }
  func.func @transform_4(%arg0: i32) -> (i32, i32) {
    %c0_i32 = arith.constant 0 : i32
    %c0_i32_0 = arith.constant 0 : i32
    %c0_i32_1 = arith.constant 0 : i32
    return %c0_i32, %c0_i32_0 : i32, i32
  }
  func.func @transform_5(%arg0: i32) -> (i32, i32) {
    %c0_i32 = arith.constant 0 : i32
    %c0_i32_0 = arith.constant 0 : i32
    return %arg0, %c0_i32 : i32, i32
  }
}

</mosaic_0001>

<llo_original>
// kernel: tpu_custom_call.1
$region0: #{tpu_custom_call.1}
  #allocation0 [shape = 'u32[]', space=smem, size = 0x4, offset = 0x4, fixed_abs, tag = 'smem constant byte address 0x4 - core index']
  #allocation1 [shape = 'u32[144,128]{1,0:T(1,128)}', space=vmem, size = 0x12000, scoped, tag = 'internal scratch']
  %s0 = inlined_call_operand.vmem [shape: f32[16,256], index: 0, kind: input, shape index: {}]
  %s1 = inlined_call_operand.hbm [shape: f32[256,128], index: 1, kind: input, shape index: {}]
  %s2 = inlined_call_operand.vmem [shape: f32[1,128], index: 2, kind: input, shape index: {}]
  %s3 = inlined_call_operand.vmem [shape: f32[128,64], index: 3, kind: input, shape index: {}]
  %s4 = inlined_call_operand.vmem [shape: f32[1,64], index: 4, kind: input, shape index: {}]
  %s5 = inlined_call_operand.hbm [shape: f32[16,64], index: 5, kind: output, shape index: {}]
  %s6 = sld [smem:[#allocation0]]
  $region57: #{tpu_custom_call.1} parent=0
    _
  %s8 = ssub.s32 1, %s6
  %s9 = scalar_select 0, %s8, %s6
  $region1: #{tpu_custom_call.1} parent=0
    #allocation2 [shape = 'u8[131072]{0}', space=vmem, size = 0x20000, scoped, tag = 'input window, operand 1, single buffered']
    #allocation3 [shape = 's32[2]{0}', space=sflag, size = 0x8, scoped, tag = 'scoped memory for tpu_custom_call.1']
    #allocation4 [shape = 's32[2]{0}', space=sflag, size = 0x8, scoped, tag = 'scoped memory for tpu_custom_call.1']
    #allocation5 [shape = 'u8[8192]{0}', space=vmem, size = 0x2000, scoped, tag = 'output window, operand 0']
    %10 = vsyncpa [#allocation3], 0
    %11 = vsyncpa [#allocation4], 0
    %s12 = scalar_lea.sflag [#allocation4], 1
    %13 = vsyncpa %s12, 0
    loop: start=0, step=1, limit=4
    $region2: #{tpu_custom_call.1} parent=1 // loop_pre_header
      _
    $region3: #{tpu_custom_call.1} parent=1 // loop_header
      %s15 = sphi 0, %s19
      %p16 = scmp.ge.s32.totalorder %s15, 4
      %s25 = sphi 0, %s27
      %s28 = sphi 0, %s25
      %s29 = sphi 0, %s28
      %s45 = sphi 0, %s29
      %s49 = sphi 0, %s49
      %s51 = sphi 0, %s49
      %s52 = sphi 0, %s51
      %s66 = sphi 0, %s52
      %s70 = sphi 0, %s70
      %s72 = sphi 0, %s70
      %s73 = sphi 0, %s72
      %s87 = sphi 0, %s73
      %s91 = sphi 0, %s91
      %s93 = sphi 0, %s91
      %s94 = sphi 0, %s93
      %s108 = sphi 0, %s94
      %s112 = sphi 0, %s112
      %s114 = sphi 0, %s112
      %s115 = sphi 0, %s114
      %s129 = sphi 0, %s115
      %s135 = sphi 0, %s137
      %s138 = sphi 0, %s135
      %s139 = sphi 0, %s138
      %s155 = sphi 0, %s139
    $region4: #{tpu_custom_call.1} parent=1 // loop_header_branch
      %18 = sbr.rel (%p16) target = $region8
    $region5: #{tpu_custom_call.1} parent=1 // loop_body
      %s20 = ssub.s32 %s15, 1
      %s21 = ssub.s32 %s15, 2
      %s22 = sadd.s32 %s15, 1
      %s23 = ssub.s32 %s15, %s22
      %p24 = scmp.eq.s32.totalorder %s23, 0
      %s26 = sadd.s32 %s25, 1
      %s27 = scalar_select %p24, %s25, %s26
      %p30 = pneg %p24
      %p31 = scmp.eq.s32.totalorder %s15, 1
      %p32 = por %p30, %p31
      %p33 = scmp.ne.s32.totalorder %s25, %s28
      %p34 = scmp.eq.s32.totalorder %s15, 0
      %p35 = por %p33, %p34
      %p36 = scmp.ne.s32.totalorder %s25, %s28
      %p37 = scmp.eq.s32.totalorder %s20, 1
      %p38 = por %p36, %p37
      %p39 = scmp.ne.s32.totalorder %s28, %s29
      %p40 = scmp.eq.s32.totalorder %s20, 0
      %p41 = por %p39, %p40
      %p42 = scmp.ne.s32.totalorder %s28, %s29
      %p43 = scmp.eq.s32.totalorder %s21, 1
      %p44 = por %p42, %p43
      %p46 = scmp.ne.s32.totalorder %s29, %s45
      %p47 = scmp.eq.s32.totalorder %s21, 0
      %p48 = por %p46, %p47
      %s50 = sadd.s32 %s49, 1
      %p53 = scmp.eq.s32.totalorder %s15, 1
      %p54 = scmp.ne.s32.totalorder %s49, %s51
      %p55 = scmp.eq.s32.totalorder %s15, 0
      %p56 = por %p54, %p55
      %p57 = scmp.ne.s32.totalorder %s49, %s51
      %p58 = scmp.eq.s32.totalorder %s20, 1
      %p59 = por %p57, %p58
      %p60 = scmp.ne.s32.totalorder %s51, %s52
      %p61 = scmp.eq.s32.totalorder %s20, 0
      %p62 = por %p60, %p61
      %p63 = scmp.ne.s32.totalorder %s51, %s52
      %p64 = scmp.eq.s32.totalorder %s21, 1
      %p65 = por %p63, %p64
      %p67 = scmp.ne.s32.totalorder %s52, %s66
      %p68 = scmp.eq.s32.totalorder %s21, 0
      %p69 = por %p67, %p68
      %s71 = sadd.s32 %s70, 1
      %p74 = scmp.eq.s32.totalorder %s15, 1
      %p75 = scmp.ne.s32.totalorder %s70, %s72
      %p76 = scmp.eq.s32.totalorder %s15, 0
      %p77 = por %p75, %p76
      %p78 = scmp.ne.s32.totalorder %s70, %s72
      %p79 = scmp.eq.s32.totalorder %s20, 1
      %p80 = por %p78, %p79
      %p81 = scmp.ne.s32.totalorder %s72, %s73
      %p82 = scmp.eq.s32.totalorder %s20, 0
      %p83 = por %p81, %p82
      %p84 = scmp.ne.s32.totalorder %s72, %s73
      %p85 = scmp.eq.s32.totalorder %s21, 1
      %p86 = por %p84, %p85
      %p88 = scmp.ne.s32.totalorder %s73, %s87
      %p89 = scmp.eq.s32.totalorder %s21, 0
      %p90 = por %p88, %p89
      %s92 = sadd.s32 %s91, 1
      %p95 = scmp.eq.s32.totalorder %s15, 1
      %p96 = scmp.ne.s32.totalorder %s91, %s93
      %p97 = scmp.eq.s32.totalorder %s15, 0
      %p98 = por %p96, %p97
      %p99 = scmp.ne.s32.totalorder %s91, %s93
      %p100 = scmp.eq.s32.totalorder %s20, 1
      %p101 = por %p99, %p100
      %p102 = scmp.ne.s32.totalorder %s93, %s94
      %p103 = scmp.eq.s32.totalorder %s20, 0
      %p104 = por %p102, %p103
      %p105 = scmp.ne.s32.totalorder %s93, %s94
      %p106 = scmp.eq.s32.totalorder %s21, 1
      %p107 = por %p105, %p106
      %p109 = scmp.ne.s32.totalorder %s94, %s108
      %p110 = scmp.eq.s32.totalorder %s21, 0
      %p111 = por %p109, %p110
      %s113 = sadd.s32 %s112, 1
      %p116 = scmp.eq.s32.totalorder %s15, 1
      %p117 = scmp.ne.s32.totalorder %s112, %s114
      %p118 = scmp.eq.s32.totalorder %s15, 0
      %p119 = por %p117, %p118
      %p120 = scmp.ne.s32.totalorder %s112, %s114
      %p121 = scmp.eq.s32.totalorder %s20, 1
      %p122 = por %p120, %p121
      %p123 = scmp.ne.s32.totalorder %s114, %s115
      %p124 = scmp.eq.s32.totalorder %s20, 0
      %p125 = por %p123, %p124
      %p126 = scmp.ne.s32.totalorder %s114, %s115
      %p127 = scmp.eq.s32.totalorder %s21, 1
      %p128 = por %p126, %p127
      %p130 = scmp.ne.s32.totalorder %s115, %s129
      %p131 = scmp.eq.s32.totalorder %s21, 0
      %p132 = por %p130, %p131
      %s133 = ssub.s32 %s15, %s22
      %p134 = scmp.eq.s32.totalorder %s133, 0
      %s136 = sadd.s32 %s135, 1
      %s137 = scalar_select %p134, %s135, %s136
      %p140 = pneg %p134
      %p141 = scmp.eq.s32.totalorder %s15, 1
      %p142 = por %p140, %p141
      %p143 = scmp.ne.s32.totalorder %s135, %s138
      %p144 = scmp.eq.s32.totalorder %s15, 0
      %p145 = por %p143, %p144
      %p146 = scmp.ne.s32.totalorder %s135, %s138
      %p147 = scmp.eq.s32.totalorder %s20, 1
      %p148 = por %p146, %p147
      %p149 = scmp.ne.s32.totalorder %s138, %s139
      %p150 = scmp.eq.s32.totalorder %s20, 0
      %p151 = por %p149, %p150
      %p152 = scmp.ne.s32.totalorder %s138, %s139
      %p153 = scmp.eq.s32.totalorder %s21, 1
      %p154 = por %p152, %p153
      %p156 = scmp.ne.s32.totalorder %s139, %s155
      %p157 = scmp.eq.s32.totalorder %s21, 0
      %p158 = por %p156, %p157
      %p159 = scmp.le.s32.totalorder 1, %s15
      %p160 = scmp.lt.s32.totalorder %s15, 3
      %p161 = pnand %p159, %p160
      %p162 = pneg %p161
      // Predicated region
      $region9: #{tpu_custom_call.1} parent=5 // pred_check
        _
      $region10: #{tpu_custom_call.1} parent=5 // pred_check_branch
        %164 = sbr.rel (%p161) target = $region12
      $region11: #{tpu_custom_call.1} parent=5 // pred_region
        %s165 = ssub.s32 %s15, 1
        // Predicated region
        $region13: #{tpu_custom_call.1} parent=11 // pred_check
          %p166 = pneg %p62
        $region14: #{tpu_custom_call.1} parent=11 // pred_check_branch
          %168 = sbr.rel (%p166) target = $region16
        $region15: #{tpu_custom_call.1} parent=11 // pred_region
          %s170 = ssub.s32 4096, 4096
          %171 = vsyncadd [#allocation3], %s170
          %s172 = sshll.u32 [#allocation2], 4
          %s173 = int_to_ptr.vmem [resolvable:$true] %s172
          %178 = dma.hbm_to_vmem [thread:$0]  %s1, 4096, %s173, [#allocation3], 128, 128, 8
        $region16: #{tpu_custom_call.1} parent=11 // pred_fallthru
          _
        // Predicated region
        $region17: #{tpu_custom_call.1} parent=11 // pred_check
          %p179 = pneg %p83
        $region18: #{tpu_custom_call.1} parent=11 // pred_check_branch
          %181 = sbr.rel (%p179) target = $region20
        $region19: #{tpu_custom_call.1} parent=11 // pred_region
          _
        $region20: #{tpu_custom_call.1} parent=11 // pred_fallthru
          _
        // Predicated region
        $region21: #{tpu_custom_call.1} parent=11 // pred_check
          %p182 = pneg %p104
        $region22: #{tpu_custom_call.1} parent=11 // pred_check_branch
          %184 = sbr.rel (%p182) target = $region24
        $region23: #{tpu_custom_call.1} parent=11 // pred_region
          _
        $region24: #{tpu_custom_call.1} parent=11 // pred_fallthru
          _
        // Predicated region
        $region25: #{tpu_custom_call.1} parent=11 // pred_check
          %p185 = pneg %p125
        $region26: #{tpu_custom_call.1} parent=11 // pred_check_branch
          %187 = sbr.rel (%p185) target = $region28
        $region27: #{tpu_custom_call.1} parent=11 // pred_region
          _
        $region28: #{tpu_custom_call.1} parent=11 // pred_fallthru
          _
      $region12: #{tpu_custom_call.1} parent=5 // pred_fallthru
        _
      %p188 = scmp.lt.s32.totalorder %s15, 2
      // Predicated region
      $region29: #{tpu_custom_call.1} parent=5 // pred_check
        %p189 = pneg %p188
      $region30: #{tpu_custom_call.1} parent=5 // pred_check_branch
        %191 = sbr.rel (%p189) target = $region32
      $region31: #{tpu_custom_call.1} parent=5 // pred_region
        // Predicated region
        $region33: #{tpu_custom_call.1} parent=31 // pred_check
          %p192 = pneg %p35
        $region34: #{tpu_custom_call.1} parent=31 // pred_check_branch
          %194 = sbr.rel (%p192) target = $region36
        $region35: #{tpu_custom_call.1} parent=31 // pred_region
          %p195 = scmp.lt.s32.totalorder %s15, 1
          %s196 = scalar_select %p195, %s15, 1
          %s197 = smul.addr %s196, 2
          %s198 = smul.addr %s197, 8
          %s199 = scalar_lea.vmem %s0, %s198
        $region36: #{tpu_custom_call.1} parent=31 // pred_fallthru
          _
      $region32: #{tpu_custom_call.1} parent=5 // pred_fallthru
        _
      %p200 = scmp.le.s32.totalorder 1, %s15
      %p201 = scmp.lt.s32.totalorder %s15, 3
      %p202 = pnand %p200, %p201
      %p203 = pneg %p202
      // Predicated region
      $region37: #{tpu_custom_call.1} parent=5 // pred_check
        _
      $region38: #{tpu_custom_call.1} parent=5 // pred_check_branch
        %205 = sbr.rel (%p202) target = $region40
      $region39: #{tpu_custom_call.1} parent=5 // pred_region
        %s206 = ssub.s32 %s15, 1
        // Predicated region
        $region41: #{tpu_custom_call.1} parent=39 // pred_check
          %p207 = pneg %p62
        $region42: #{tpu_custom_call.1} parent=39 // pred_check_branch
          %209 = sbr.rel (%p207) target = $region44
        $region43: #{tpu_custom_call.1} parent=39 // pred_region
          %210 = dma.done [#allocation3], 4096
        $region44: #{tpu_custom_call.1} parent=39 // pred_fallthru
          _
        %p211 = scmp.lt.s32.totalorder %s20, 1
        %s212 = scalar_select %p211, %s20, 1
        %s213 = smul.addr %s212, 2
        %s214 = smul.addr %s213, 8
        %s215 = scalar_lea.vmem %s0, %s214
        %p216 = pneg %p41
        %p217 = pneg %p38
        %p218 = pneg %p62
        %p219 = pneg %p59
        %p220 = pneg %p83
        %p221 = pneg %p80
        %p222 = pneg %p104
        %p223 = pneg %p101
        %p224 = pneg %p125
        %p225 = pneg %p122
        %p226 = pneg %p151
        %p227 = pneg %p148
        %s228 = sand.u32 %s138, 1
        %s229 = scalar_lea.sflag [#allocation4], %s228
        %s230 = sand.u32 %s138, 1
        %s231 = smul.addr %s230, 8
        %s232 = scalar_lea.vmem [#allocation5], %s231
        %p233 = scmp.lt.s32.totalorder %s20, 1
        %s234 = scalar_select %p233, %s20, 1
        %s235 = smul.addr %s234, 2
        %s236 = smul.addr %s235, 8
        %s237 = scalar_lea.vmem %s0, %s236
        %v238 = vld [vmem:[%s237] sm:$0xff]
        %v239 = vld [vmem:[%s237 + $0x8] sm:$0xff]
        %v240 = vld [vmem:[#allocation2] sm:$0xff]
        %v241 = vld [vmem:[#allocation2 + $0x8] sm:$0xff]
        %v242 = vld [vmem:[#allocation2 + $0x10] sm:$0xff]
        %v243 = vld [vmem:[#allocation2 + $0x18] sm:$0xff]
        %v244 = vld [vmem:[#allocation2 + $0x20] sm:$0xff]
        %v245 = vld [vmem:[#allocation2 + $0x28] sm:$0xff]
        %v246 = vld [vmem:[#allocation2 + $0x30] sm:$0xff]
        %v247 = vld [vmem:[#allocation2 + $0x38] sm:$0xff]
        %v248 = vld [vmem:[#allocation2 + $0x40] sm:$0xff]
        %v249 = vld [vmem:[#allocation2 + $0x48] sm:$0xff]
        %v250 = vld [vmem:[#allocation2 + $0x50] sm:$0xff]
        %v251 = vld [vmem:[#allocation2 + $0x58] sm:$0xff]
        %v252 = vld [vmem:[#allocation2 + $0x60] sm:$0xff]
        %v253 = vld [vmem:[#allocation2 + $0x68] sm:$0xff]
        %v254 = vld [vmem:[#allocation2 + $0x70] sm:$0xff]
        %v255 = vld [vmem:[#allocation2 + $0x78] sm:$0xff]
        %v256 = vld [vmem:[#allocation2 + $0x80] sm:$0xff]
        %v257 = vld [vmem:[#allocation2 + $0x88] sm:$0xff]
        %v258 = vld [vmem:[#allocation2 + $0x90] sm:$0xff]
        %v259 = vld [vmem:[#allocation2 + $0x98] sm:$0xff]
        %v260 = vld [vmem:[#allocation2 + $0xa0] sm:$0xff]
        %v261 = vld [vmem:[#allocation2 + $0xa8] sm:$0xff]
        %v262 = vld [vmem:[#allocation2 + $0xb0] sm:$0xff]
        %v263 = vld [vmem:[#allocation2 + $0xb8] sm:$0xff]
        %v264 = vld [vmem:[#allocation2 + $0xc0] sm:$0xff]
        %v265 = vld [vmem:[#allocation2 + $0xc8] sm:$0xff]
        %v266 = vld [vmem:[#allocation2 + $0xd0] sm:$0xff]
        %v267 = vld [vmem:[#allocation2 + $0xd8] sm:$0xff]
        %v268 = vld [vmem:[#allocation2 + $0xe0] sm:$0xff]
        %v269 = vld [vmem:[#allocation2 + $0xe8] sm:$0xff]
        %v270 = vld [vmem:[#allocation2 + $0xf0] sm:$0xff]
        %v271 = vld [vmem:[#allocation2 + $0xf8] sm:$0xff]
        %v272 = vld [vmem:[%s2] sm:$0x1]
        %v274 = vlaneseq
        %v275 = vshrl.u32 %v274, 7
        %v276 = vsub.s32 0, %v275
        %v277 = vrot.slane %v272, %v276
        %279 = vmatprep.subr.mxu0 0.0
        %280 = vmatpush1.msra.mxu0 %v255
        %281 = vmatprep.subr.mxu0 0.0
        %282 = vmatpush1.msra.mxu0 %v254
        %283 = vmatprep.subr.mxu0 0.0
        %284 = vmatpush1.msra.mxu0 %v253
        %285 = vmatprep.subr.mxu0 0.0
        %286 = vmatpush1.msra.mxu0 %v252
        %287 = vmatprep.subr.mxu0 0.0
        %288 = vmatpush1.msra.mxu0 %v251
        %289 = vmatprep.subr.mxu0 0.0
        %290 = vmatpush1.msra.mxu0 %v250
        %291 = vmatprep.subr.mxu0 0.0
        %292 = vmatpush1.msra.mxu0 %v249
        %293 = vmatprep.subr.mxu0 0.0
        %294 = vmatpush1.msra.mxu0 %v248
        %295 = vmatprep.subr.mxu0 0.0
        %296 = vmatpush1.msra.mxu0 %v247
        %297 = vmatprep.subr.mxu0 0.0
        %298 = vmatpush1.msra.mxu0 %v246
        %299 = vmatprep.subr.mxu0 0.0
        %300 = vmatpush1.msra.mxu0 %v245
        %301 = vmatprep.subr.mxu0 0.0
        %302 = vmatpush1.msra.mxu0 %v244
        %303 = vmatprep.subr.mxu0 0.0
        %304 = vmatpush1.msra.mxu0 %v243
        %305 = vmatprep.subr.mxu0 0.0
        %306 = vmatpush1.msra.mxu0 %v242
        %307 = vmatprep.subr.mxu0 0.0
        %308 = vmatpush1.msra.mxu0 %v241
        %309 = vmatprep.subr.mxu0 0.0
        %310 = vmatpush1.msra.mxu0 %v240
        %311 = vmatprep.subr.mxu0 0.0
        %312 = vmatpush2.msra.mxu0 %v271
        %313 = vmatprep.subr.mxu0 0.0
        %314 = vmatpush2.msra.mxu0 %v270
        %315 = vmatprep.subr.mxu0 0.0
        %316 = vmatpush2.msra.mxu0 %v269
        %317 = vmatprep.subr.mxu0 0.0
        %318 = vmatpush2.msra.mxu0 %v268
        %319 = vmatprep.subr.mxu0 0.0
        %320 = vmatpush2.msra.mxu0 %v267
        %321 = vmatprep.subr.mxu0 0.0
        %322 = vmatpush2.msra.mxu0 %v266
        %323 = vmatprep.subr.mxu0 0.0
        %324 = vmatpush2.msra.mxu0 %v265
        %325 = vmatprep.subr.mxu0 0.0
        %326 = vmatpush2.msra.mxu0 %v264
        %327 = vmatprep.subr.mxu0 0.0
        %328 = vmatpush2.msra.mxu0 %v263
        %329 = vmatprep.subr.mxu0 0.0
        %330 = vmatpush2.msra.mxu0 %v262
        %331 = vmatprep.subr.mxu0 0.0
        %332 = vmatpush2.msra.mxu0 %v261
        %333 = vmatprep.subr.mxu0 0.0
        %334 = vmatpush2.msra.mxu0 %v260
        %335 = vmatprep.subr.mxu0 0.0
        %336 = vmatpush2.msra.mxu0 %v259
        %337 = vmatprep.subr.mxu0 0.0
        %338 = vmatpush2.msra.mxu0 %v258
        %339 = vmatprep.subr.mxu0 0.0
        %340 = vmatpush2.msra.mxu0 %v257
        %341 = vmatprep.subr.mxu0 0.0
        %342 = vmatpush2.msra.mxu0 %v256
        %343 = vmatprep.mubr.f32.mxu0 %v239
        %344 = vmatmul.mubr.f32.gmra.mxu0 %v238
        %v345 = vpop.f32.mrf.mxu0
        %v346 = vadd.f32 %v277, %v345
        %v347 = vpop.f32.mrf.mxu0
        %348 = vdwg.mxu0
        %vm349 = vcmp.ge.f32.partialorder %v346, 0.0
        %v350 = vmul.f32 %v346, 0.01
        %v351 = vsel %vm349, %v346, %v350
        %v352 = vld [vmem:[%s3] sm:$0xff]
        %v353 = vld [vmem:[%s3 + $0x8] sm:$0xff]
        %v354 = vld [vmem:[%s3 + $0x10] sm:$0xff]
        %v355 = vld [vmem:[%s3 + $0x18] sm:$0xff]
        %v356 = vld [vmem:[%s3 + $0x20] sm:$0xff]
        %v357 = vld [vmem:[%s3 + $0x28] sm:$0xff]
        %v358 = vld [vmem:[%s3 + $0x30] sm:$0xff]
        %v359 = vld [vmem:[%s3 + $0x38] sm:$0xff]
        %v360 = vld [vmem:[%s3 + $0x40] sm:$0xff]
        %v361 = vld [vmem:[%s3 + $0x48] sm:$0xff]
        %v362 = vld [vmem:[%s3 + $0x50] sm:$0xff]
        %v363 = vld [vmem:[%s3 + $0x58] sm:$0xff]
        %v364 = vld [vmem:[%s3 + $0x60] sm:$0xff]
        %v365 = vld [vmem:[%s3 + $0x68] sm:$0xff]
        %v366 = vld [vmem:[%s3 + $0x70] sm:$0xff]
        %v367 = vld [vmem:[%s3 + $0x78] sm:$0xff]
        %v368 = vld [vmem:[%s4] sm:$0x1]
        %v370 = vlaneseq
        %v371 = vshrl.u32 %v370, 7
        %v372 = vsub.s32 0, %v371
        %v373 = vrot.slane %v368, %v372
        %375 = vmatprep.subr.mxu0 0.0
        %376 = vmatpush1.msra.mxu0 %v367
        %377 = vmatprep.subr.mxu0 0.0
        %378 = vmatpush1.msra.mxu0 %v366
        %379 = vmatprep.subr.mxu0 0.0
        %380 = vmatpush1.msra.mxu0 %v365
        %381 = vmatprep.subr.mxu0 0.0
        %382 = vmatpush1.msra.mxu0 %v364
        %383 = vmatprep.subr.mxu0 0.0
        %384 = vmatpush1.msra.mxu0 %v363
        %385 = vmatprep.subr.mxu0 0.0
        %386 = vmatpush1.msra.mxu0 %v362
        %387 = vmatprep.subr.mxu0 0.0
        %388 = vmatpush1.msra.mxu0 %v361
        %389 = vmatprep.subr.mxu0 0.0
        %390 = vmatpush1.msra.mxu0 %v360
        %391 = vmatprep.subr.mxu0 0.0
        %392 = vmatpush1.msra.mxu0 %v359
        %393 = vmatprep.subr.mxu0 0.0
        %394 = vmatpush1.msra.mxu0 %v358
        %395 = vmatprep.subr.mxu0 0.0
        %396 = vmatpush1.msra.mxu0 %v357
        %397 = vmatprep.subr.mxu0 0.0
        %398 = vmatpush1.msra.mxu0 %v356
        %399 = vmatprep.subr.mxu0 0.0
        %400 = vmatpush1.msra.mxu0 %v355
        %401 = vmatprep.subr.mxu0 0.0
        %402 = vmatpush1.msra.mxu0 %v354
        %403 = vmatprep.subr.mxu0 0.0
        %404 = vmatpush1.msra.mxu0 %v353
        %405 = vmatprep.subr.mxu0 0.0
        %406 = vmatpush1.msra.mxu0 %v352
        %407 = vmatprep.subr.mxu0 0.0
        %408 = vmatpush2.msra.mxu0 0.0
        %409 = vmatprep.subr.mxu0 0.0
        %410 = vmatpush2.msra.mxu0 0.0
        %411 = vmatprep.subr.mxu0 0.0
        %412 = vmatpush2.msra.mxu0 0.0
        %413 = vmatprep.subr.mxu0 0.0
        %414 = vmatpush2.msra.mxu0 0.0
        %415 = vmatprep.subr.mxu0 0.0
        %416 = vmatpush2.msra.mxu0 0.0
        %417 = vmatprep.subr.mxu0 0.0
        %418 = vmatpush2.msra.mxu0 0.0
        %419 = vmatprep.subr.mxu0 0.0
        %420 = vmatpush2.msra.mxu0 0.0
        %421 = vmatprep.subr.mxu0 0.0
        %422 = vmatpush2.msra.mxu0 0.0
        %423 = vmatprep.subr.mxu0 0.0
        %424 = vmatpush2.msra.mxu0 0.0
        %425 = vmatprep.subr.mxu0 0.0
        %426 = vmatpush2.msra.mxu0 0.0
        %427 = vmatprep.subr.mxu0 0.0
        %428 = vmatpush2.msra.mxu0 0.0
        %429 = vmatprep.subr.mxu0 0.0
        %430 = vmatpush2.msra.mxu0 0.0
        %431 = vmatprep.subr.mxu0 0.0
        %432 = vmatpush2.msra.mxu0 0.0
        %433 = vmatprep.subr.mxu0 0.0
        %434 = vmatpush2.msra.mxu0 0.0
        %435 = vmatprep.subr.mxu0 0.0
        %436 = vmatpush2.msra.mxu0 0.0
        %437 = vmatprep.subr.mxu0 0.0
        %438 = vmatpush2.msra.mxu0 0.0
        %439 = vmatprep.mubr.f32.mxu0 0.0
        %440 = vmatmul.mubr.f32.gmra.mxu0 %v351
        %v441 = vpop.f32.mrf.mxu0
        %v442 = vadd.f32 %v373, %v441
        %v443 = vpop.f32.mrf.mxu0
        %444 = vdwg.mxu0
        %v445 = vmul.f32 %v442, %v442
        %vm446 = vcmask 523264
        %v447 = vsel %vm446, %v445, 0.0
        %448 = vadd.xlane.f32.xlu0 %v447
        %v449 = vpop.xlane.xlu0 %448
        %v450 = vmax.f32 %v449, 1e-24
        %v451 = vrsqrt.pop %v450
        %v452 = vmul.f32 %v442, %v451
        %453 = vst.msk [vmem:[%s232] sm:$0xff] %vm446, %v452
        %s454 = sand.u32 %s138, 1
        %s455 = scalar_lea.sflag [#allocation4], %s454
        %s456 = sand.u32 %s138, 1
        %s457 = smul.addr %s456, 8
        %s458 = scalar_lea.vmem [#allocation5], %s457
        // Predicated region
        $region45: #{tpu_custom_call.1} parent=39 // pred_check
          %p459 = pneg %p148
        $region46: #{tpu_custom_call.1} parent=39 // pred_check_branch
          %461 = sbr.rel (%p459) target = $region48
        $region47: #{tpu_custom_call.1} parent=39 // pred_region
          %s463 = ssub.s32 128, 128
          %464 = vsyncadd %s455, %s463
          %s465 = smul.addr %s20, 128
          %s466 = scalar_lea.hbm %s5, %s465
          %s468 = sshll.u32 %s458, 4
          %s469 = int_to_ptr.vmem [resolvable:$true] %s468
          %471 = dma.vmem_to_hbm [thread:$0]  %s469, 128, %s466, %s455
        $region48: #{tpu_custom_call.1} parent=39 // pred_fallthru
          _
      $region40: #{tpu_custom_call.1} parent=5 // pred_fallthru
        _
      %p472 = scmp.le.s32.totalorder 2, %s15
      // Predicated region
      $region49: #{tpu_custom_call.1} parent=5 // pred_check
        %p473 = pneg %p472
      $region50: #{tpu_custom_call.1} parent=5 // pred_check_branch
        %475 = sbr.rel (%p473) target = $region52
      $region51: #{tpu_custom_call.1} parent=5 // pred_region
        %s476 = ssub.s32 %s15, 2
        // Predicated region
        $region53: #{tpu_custom_call.1} parent=51 // pred_check
          %p477 = pneg %p154
        $region54: #{tpu_custom_call.1} parent=51 // pred_check_branch
          %479 = sbr.rel (%p477) target = $region56
        $region55: #{tpu_custom_call.1} parent=51 // pred_region
          %s480 = sand.u32 %s139, 1
          %s481 = scalar_lea.sflag [#allocation4], %s480
          %s482 = sand.u32 %s139, 1
          %s483 = smul.addr %s482, 8
          %s484 = scalar_lea.vmem [#allocation5], %s483
          %485 = dma.done %s481, 128
        $region56: #{tpu_custom_call.1} parent=51 // pred_fallthru
          _
      $region52: #{tpu_custom_call.1} parent=5 // pred_fallthru
        _
    $region6: #{tpu_custom_call.1} parent=1 // loop_footer
      %s19 = sadd.s32 1, %s15
    $region7: #{tpu_custom_call.1} parent=1 // loop_footer_branch
      %14 = sbr.rel target = $region3
    $region8: #{tpu_custom_call.1} parent=1 // loop_exit
      _
    %486 = vsyncpa [#allocation3], 1
    %s487 = scalar_lea.sflag [#allocation3], 1
    %488 = vsyncpa %s487, 1
    %489 = vsyncpa [#allocation4], 1
    %s490 = scalar_lea.sflag [#allocation4], 1
    %491 = vsyncpa %s490, 1

</llo_original>
